<compile_context>
chip_gen: v5e
topology: v5e:2x2
jax: 0.10.0
libtpu: 0.0.40
codegen_flags: <defaults>
</compile_context>

<pallas_src>
import functools

import numpy as np
import jax
import jax.numpy as jnp
from jax import lax
from jax.experimental import pallas as pl
from jax.experimental.pallas import tpu as pltpu


def _round_up(v: int, m: int) -> int:
    return ((v + m - 1) // m) * m


# ---------------------------------------------------------------------------
# Pass A: per-object running argmax of q * attractive_mask (alpha selection)
# ---------------------------------------------------------------------------
def _alpha_kernel(beta_ref, oid_ref, uoid_ref,
                  qmax_ref, idx_ref, cnt_ref, *,
                  q_min: float, n_real: int, tn: int, tiles_per_core: int):
    c = pl.program_id(0)
    t = pl.program_id(1)

    @pl.when(t == 0)
    def _init():
        # -inf init so q == 0 objects (q_min == 0 edge case) are still recorded.
        qmax_ref[...] = jnp.full(qmax_ref.shape, -jnp.inf, qmax_ref.dtype)
        idx_ref[...] = jnp.zeros(idx_ref.shape, idx_ref.dtype)
        cnt_ref[...] = jnp.zeros(cnt_ref.shape, cnt_ref.dtype)

    beta = beta_ref[...]                       # (1, TN) f32
    oid = oid_ref[...]                         # (1, TN) i32
    uoid = uoid_ref[...]                       # (K, 1)  i32
    k_obj = uoid.shape[0]

    base = (c * tiles_per_core + t) * tn       # global hit index of lane 0
    lane = lax.broadcasted_iota(jnp.int32, (1, tn), 1)
    in_range = (lane + base) < n_real          # guards pad columns / id collisions

    # q = arctanh(beta)^2 + q_min  (exact, matches torch)
    ath = 0.5 * jnp.log((1.0 + beta) / (1.0 - beta))
    q = ath * ath + q_min                      # (1, TN)

    att = jnp.logical_and(oid == uoid, in_range)            # (K, TN)
    qm = jnp.where(att, q, 0.0)                              # == q * attractive_mask

    tmax = jnp.max(qm, axis=1, keepdims=True)                # (K, 1)
    col = lax.broadcasted_iota(jnp.int32, (k_obj, tn), 1)
    first = jnp.min(jnp.where(qm == tmax, col, tn), axis=1, keepdims=True)

    # Cross-tile running argmax: strictly-greater keeps the first occurrence.
    upd = tmax > qmax_ref[...]
    qmax_ref[...] = jnp.where(upd, tmax, qmax_ref[...])
    idx_ref[...] = jnp.where(upd, first + base, idx_ref[...])
    cnt_ref[...] = cnt_ref[...] + jnp.sum(att.astype(jnp.float32), axis=1,
                                          keepdims=True)


# ---------------------------------------------------------------------------
# Pass B: attractive / repulsive / noise per-object partial sums
# ---------------------------------------------------------------------------
def _loss_kernel(packed_ref, oid_ref, uoid_ref, kmat_ref,
                 att_ref, rep_ref, nsum_ref, ncnt_ref, *,
                 q_min: float, noise_threshold: int, d: int):
    t = pl.program_id(1)

    @pl.when(t == 0)
    def _init():
        att_ref[...] = jnp.zeros(att_ref.shape, att_ref.dtype)
        rep_ref[...] = jnp.zeros(rep_ref.shape, rep_ref.dtype)
        nsum_ref[...] = jnp.zeros(nsum_ref.shape, nsum_ref.dtype)
        ncnt_ref[...] = jnp.zeros(ncnt_ref.shape, ncnt_ref.dtype)

    blk = packed_ref[...]                      # (D+4, TN): [x; 1; |x|^2; beta; w]
    oid = oid_ref[...]                         # (1, TN) i32
    uoid = uoid_ref[...]                       # (K, 1)  i32
    kmat = kmat_ref[...]                       # (K, D+4): [-2 x_k, |x_k|^2, 1, 0, 0]

    beta = packed_ref[d + 2:d + 3, :]          # (1, TN)
    w = packed_ref[d + 3:d + 4, :]             # (1, TN)

    ath = 0.5 * jnp.log((1.0 + beta) / (1.0 - beta))
    wq = w * (ath * ath + q_min)               # (1, TN)  w_j * q_j

    # Pairwise squared distances from ONE augmented MXU matmul:
    #   d2_jk = -2 x_k.x_j + |x_k|^2 * 1 + 1 * |x_j|^2   (beta/w rows hit 0 cols)
    d2 = jnp.dot(kmat, blk, preferred_element_type=jnp.float32,
                 precision=lax.Precision.HIGHEST)           # (K, TN)
    d2 = jnp.maximum(d2, 0.0)
    # TODO(synk): if the single EUP slot binds on v6e/v7x, this sqrt path can run
    #             in bf16 there for ~2x EUP throughput (tolerance permitting).
    dist = jnp.sqrt(d2)
    hinge = jnp.maximum(1.0 - dist, 0.0)       # == (dist < 1) * (1 - dist)

    att = oid == uoid                          # (K, TN); pad hits have w == 0
    att_ref[...] += jnp.sum(jnp.where(att, wq * d2, 0.0), axis=1, keepdims=True)
    rep_ref[...] += jnp.sum(jnp.where(att, 0.0, wq * hinge), axis=1, keepdims=True)

    noise = oid <= noise_threshold             # (1, TN); pad sentinel > threshold
    nsum_ref[...] += jnp.sum(jnp.where(noise, beta, 0.0), axis=1, keepdims=True)
    ncnt_ref[...] += jnp.sum(noise.astype(jnp.float32), axis=1, keepdims=True)


# ---------------------------------------------------------------------------
# Wrapper
# ---------------------------------------------------------------------------
def condensation_loss(beta, x, object_id, weights=None, *, q_min=0.1,
                      noise_threshold=0, max_n_rep=0, max_objects=32,
                      block_n=8192, num_cores=2):
    """JAX/Pallas equivalent of CondensationLoss.forward.

    max_objects bounds the number of distinct non-noise object ids (one slot is
    consumed by the noise sentinel when noise hits exist); ids beyond that are
    silently dropped, mirroring the static padding of torch.unique.
    """
    # TODO(synk): max_n_rep > 0 stochastic repulsive subsampling (torch.rand_like
    #             gating) is not implemented; the module default (0) disables it.
    assert max_n_rep == 0, "stochastic repulsive subsampling not implemented"
    eps = 1e-9
    n, d = x.shape
    k_obj = int(max_objects)
    if weights is None:
        weights = jnp.ones((n,), jnp.float32)

    x32 = x.astype(jnp.float32)
    beta32 = beta.reshape(-1).astype(jnp.float32)
    w32 = weights.reshape(-1).astype(jnp.float32)
    oid32 = object_id.reshape(-1).astype(jnp.int32)

    # ---- tiling: lane-dense tiles, padded with zero-weight sentinel hits ----
    block_n = max(128, _round_up(int(block_n), 128))
    tn = min(block_n, _round_up(n, 128))
    n_pad = _round_up(n, tn * num_cores)
    pad = n_pad - n
    tiles_per_core = (n_pad // tn) // num_cores
    pad_oid = int(np.iinfo(np.int32).max)   # > noise_threshold, never a real id

    # One packed f32 hit tensor -> a single streaming DMA per tile in pass B.
    # Rows: [0:d]=x^T, d=1, d+1=|x|^2, d+2=beta, d+3=weights.
    packed = jnp.concatenate([
        x32.T,
        jnp.ones((1, n), jnp.float32),
        jnp.sum(x32 * x32, axis=1).reshape(1, n),
        beta32.reshape(1, n),
        w32.reshape(1, n)], axis=0)
    packed = jnp.pad(packed, ((0, 0), (0, pad)))
    beta_p = jnp.pad(beta32, (0, pad)).reshape(1, n_pad)
    oid_p = jnp.pad(oid32, (0, pad), constant_values=pad_oid).reshape(1, n_pad)

    # unique non-noise ids, statically padded with the noise sentinel.
    # TODO(synk): jnp.unique is a device sort; for bounded small ids a bincount
    #             based table would be cheaper XLA glue.
    masked = jnp.where(oid32 > noise_threshold, oid32, jnp.int32(noise_threshold))
    uoids = jnp.unique(masked, size=k_obj, fill_value=int(noise_threshold))
    uoids = uoids.astype(jnp.int32).reshape(k_obj, 1)

    cparams = pltpu.CompilerParams(
        dimension_semantics=("parallel", "arbitrary"),
        vmem_limit_bytes=48 * 1024 * 1024)
    grid = (num_cores, tiles_per_core)

    # ------------------- pass A: alpha (condensation point) selection -------
    alpha_kernel = functools.partial(
        _alpha_kernel, q_min=float(q_min), n_real=int(n), tn=tn,
        tiles_per_core=tiles_per_core)
    qmax, aidx, cnt = pl.pallas_call(
        alpha_kernel,
        out_shape=(jax.ShapeDtypeStruct((num_cores, k_obj, 1), jnp.float32),
                   jax.ShapeDtypeStruct((num_cores, k_obj, 1), jnp.int32),
                   jax.ShapeDtypeStruct((num_cores, k_obj, 1), jnp.float32)),
        grid_spec=pltpu.PrefetchScalarGridSpec(
            num_scalar_prefetch=0, grid=grid,
            in_specs=[
                pl.BlockSpec((1, tn), lambda c, t: (0, c * tiles_per_core + t)),
                pl.BlockSpec((1, tn), lambda c, t: (0, c * tiles_per_core + t)),
                pl.BlockSpec((k_obj, 1), lambda c, t: (0, 0)),
            ],
            out_specs=[
                pl.BlockSpec((None, k_obj, 1), lambda c, t: (c, 0, 0)),
                pl.BlockSpec((None, k_obj, 1), lambda c, t: (c, 0, 0)),
                pl.BlockSpec((None, k_obj, 1), lambda c, t: (c, 0, 0)),
            ]),
        compiler_params=cparams,
    )(beta_p, oid_p, uoids)

    # ----------- tiny XLA epilogue: merge cores, build per-object params ----
    best = jnp.argmax(qmax[:, :, 0], axis=0)                  # first max -> core 0
    alphas = jnp.take_along_axis(aidx[:, :, 0], best[None, :], axis=0)[0]
    alphas = jnp.clip(alphas, 0, n - 1)
    cnt_k = jnp.sum(cnt[:, :, 0], axis=0)                     # (K,)

    beta_k = jnp.take(beta32, alphas)                         # (K,)
    x_k = jnp.take(x32, alphas, axis=0)                       # (K, D)
    q_k = jnp.arctanh(beta_k) ** 2 + q_min
    valid = (uoids.reshape(-1) > noise_threshold).astype(jnp.float32)
    n_obj = jnp.sum(valid)

    a_k = q_k * valid / ((cnt_k + eps) * n_obj)               # attractive scale
    r_k = q_k * valid / ((float(n) - cnt_k + eps) * n_obj)    # repulsive scale
    l_coward = jnp.sum((1.0 - beta_k) * valid) / n_obj

    kmat = jnp.concatenate([
        -2.0 * x_k,
        jnp.sum(x_k * x_k, axis=1, keepdims=True),
        jnp.ones((k_obj, 1), jnp.float32),
        jnp.zeros((k_obj, 2), jnp.float32)], axis=1)          # (K, D+4)

    # ------------------------- pass B: loss accumulation --------------------
    loss_kernel = functools.partial(
        _loss_kernel, q_min=float(q_min),
        noise_threshold=int(noise_threshold), d=int(d))
    acc_att, acc_rep, nsum, ncnt = pl.pallas_call(
        loss_kernel,
        out_shape=(jax.ShapeDtypeStruct((num_cores, k_obj, 1), jnp.float32),
                   jax.ShapeDtypeStruct((num_cores, k_obj, 1), jnp.float32),
                   jax.ShapeDtypeStruct((num_cores, 1, 1), jnp.float32),
                   jax.ShapeDtypeStruct((num_cores, 1, 1), jnp.float32)),
        grid_spec=pltpu.PrefetchScalarGridSpec(
            num_scalar_prefetch=0, grid=grid,
            in_specs=[
                pl.BlockSpec((d + 4, tn),
                             lambda c, t: (0, c * tiles_per_core + t)),
                pl.BlockSpec((1, tn), lambda c, t: (0, c * tiles_per_core + t)),
                pl.BlockSpec((k_obj, 1), lambda c, t: (0, 0)),
                pl.BlockSpec((k_obj, d + 4), lambda c, t: (0, 0)),
            ],
            out_specs=[
                pl.BlockSpec((None, k_obj, 1), lambda c, t: (c, 0, 0)),
                pl.BlockSpec((None, k_obj, 1), lambda c, t: (c, 0, 0)),
                pl.BlockSpec((None, 1, 1), lambda c, t: (c, 0, 0)),
                pl.BlockSpec((None, 1, 1), lambda c, t: (c, 0, 0)),
            ]),
        compiler_params=cparams,
    )(packed, oid_p, uoids, kmat)

    v_att = jnp.sum(a_k * jnp.sum(acc_att[:, :, 0], axis=0))
    v_rep = jnp.sum(r_k * jnp.sum(acc_rep[:, :, 0], axis=0))
    l_noise = jnp.sum(nsum) / jnp.sum(ncnt)

    return {"attractive": v_att, "repulsive": v_rep,
            "coward": l_coward, "noise": l_noise}


# ---------------------------------------------------------------------------
# Reference (plain NumPy mirror of the torch implementation, max_n_rep=0)
# ---------------------------------------------------------------------------
def _reference_numpy(beta, x, object_id, weights, *, q_min, noise_threshold):
    beta = beta.astype(np.float64)
    x = x.astype(np.float64)
    w = weights.astype(np.float64)
    eps = 1e-9
    not_noise = object_id > noise_threshold
    uo = np.unique(object_id[not_noise])
    att = object_id[:, None] == uo[None, :]
    q = np.arctanh(beta) ** 2 + q_min
    alphas = np.argmax(q[:, None] * att, axis=0)
    x_k = x[alphas]
    q_k = q[alphas][None, :]
    dist = np.sqrt(np.maximum(((x[:, None, :] - x_k[None, :, :]) ** 2).sum(-1), 0.0))
    qw = w[:, None] * q[:, None] * q_k
    att_norm = (att.sum(0) + eps) * len(uo)
    v_att = ((qw / att_norm)[att] * dist[att] ** 2).sum()
    rep = (~att) & (dist < 1)
    rep_norm = ((~att).sum(0) + eps) * len(uo)
    v_rep = ((qw / rep_norm)[rep] * (1 - dist[rep])).sum()
    l_cow = np.mean(1 - beta[alphas])
    l_noi = np.mean(beta[~not_noise])
    return {"attractive": v_att, "repulsive": v_rep, "coward": l_cow, "noise": l_noi}


if __name__ == "__main__":
    key = jax.random.PRNGKey(0)
    kb, kx, ko = jax.random.split(key, 3)
    N, D = 300, 8
    beta = jax.random.uniform(kb, (N,), minval=0.01, maxval=0.95, dtype=jnp.float32)
    x = jax.random.normal(kx, (N, D), dtype=jnp.float32)
    object_id = jax.random.randint(ko, (N,), 0, 6)   # id 0 == noise (threshold=0)
    # guarantee at least one noise hit and one real object
    object_id = object_id.at[0].set(0).at[1].set(1)

    # block_n=128 -> N padded 300->512, 4 tiles over 2 core-blocks: exercises the
    # cross-tile running argmax, cross-core merge and zero-weight padding paths.
    out = condensation_loss(beta, x, object_id, q_min=0.1,
                            noise_threshold=0, max_n_rep=0, block_n=128)
    out = jax.tree_util.tree_map(jax.block_until_ready, out)

    ref = _reference_numpy(np.asarray(beta), np.asarray(x),
                           np.asarray(object_id), np.ones(N),
                           q_min=0.1, noise_threshold=0)
    for name in ("attractive", "repulsive", "coward", "noise"):
        np.testing.assert_allclose(float(out[name]), ref[name],
                                   rtol=2e-3, atol=1e-4)

    print("KERNEL_OK")
</pallas_src>

<mosaic_0001>
module attributes {stable_mosaic.version = 11 : i64} {
  func.func @_alpha_kernel(%arg0: i32, %arg1: i32, %arg2: memref<1x128xf32, #tpu.memory_space<vmem>>, %arg3: memref<1x128xi32, #tpu.memory_space<vmem>>, %arg4: memref<32x1xi32, #tpu.memory_space<vmem>>, %arg5: memref<1x32x1xf32, #tpu.memory_space<vmem>>, %arg6: memref<1x32x1xi32, #tpu.memory_space<vmem>>, %arg7: memref<1x32x1xf32, #tpu.memory_space<vmem>>) attributes {dimension_semantics = [#tpu.dimension_semantics<parallel>, #tpu.dimension_semantics<arbitrary>], iteration_bounds = array<i64: 2, 2>, scalar_prefetch = 0 : i64, scratch_operands = 0 : i64, tpu.core_type = #tpu.core_type<tc>, window_params = [{transform_indices = @transform_0, window_bounds = array<i64: 1, 128>}, {transform_indices = @transform_1, window_bounds = array<i64: 1, 128>}, {pipeline_mode = #tpu.pipeline_mode<synchronous>, transform_indices = @transform_2, window_bounds = array<i64: 32, 1>}, {transform_indices = @transform_3, window_bounds = array<i64: 1, 32, 1>}, {transform_indices = @transform_4, window_bounds = array<i64: 1, 32, 1>}, {transform_indices = @transform_5, window_bounds = array<i64: 1, 32, 1>}]} {
    %c0_i32 = arith.constant 0 : i32
    %0 = arith.cmpi eq, %arg1, %c0_i32 : i32
    %1 = arith.extui %0 : i1 to i32
    %c0_i32_0 = arith.constant 0 : i32
    %2 = arith.cmpi ne, %1, %c0_i32_0 : i32
    scf.if %2 {
      %cst_35 = arith.constant 0xFF800000 : f32
      %70 = vector.broadcast %cst_35 : f32 to vector<32x1xf32>
      %c0_36 = arith.constant 0 : index
      %c0_37 = arith.constant 0 : index
      %c0_38 = arith.constant 0 : index
      %71 = vector.load %arg5[%c0_36, %c0_37, %c0_38] : memref<1x32x1xf32, #tpu.memory_space<vmem>>, vector<1x32x1xf32>
      %72 = vector.shape_cast %71 : vector<1x32x1xf32> to vector<32x1xf32>
      %73 = vector.shape_cast %70 : vector<32x1xf32> to vector<1x32x1xf32>
      tpu.vector_store %arg5[%c0_36, %c0_37, %c0_38], %73 {strides = array<i32>} : memref<1x32x1xf32, #tpu.memory_space<vmem>>, vector<1x32x1xf32>,
      %c0_i32_39 = arith.constant 0 : i32
      %74 = vector.broadcast %c0_i32_39 : i32 to vector<32x1xi32>
      %c0_40 = arith.constant 0 : index
      %c0_41 = arith.constant 0 : index
      %c0_42 = arith.constant 0 : index
      %75 = vector.load %arg6[%c0_40, %c0_41, %c0_42] : memref<1x32x1xi32, #tpu.memory_space<vmem>>, vector<1x32x1xi32>
      %76 = vector.shape_cast %75 : vector<1x32x1xi32> to vector<32x1xi32>
      %77 = vector.shape_cast %74 : vector<32x1xi32> to vector<1x32x1xi32>
      tpu.vector_store %arg6[%c0_40, %c0_41, %c0_42], %77 {strides = array<i32>} : memref<1x32x1xi32, #tpu.memory_space<vmem>>, vector<1x32x1xi32>,
      %cst_43 = arith.constant 0.000000e+00 : f32
      %78 = vector.broadcast %cst_43 : f32 to vector<32x1xf32>
      %c0_44 = arith.constant 0 : index
      %c0_45 = arith.constant 0 : index
      %c0_46 = arith.constant 0 : index
      %79 = vector.load %arg7[%c0_44, %c0_45, %c0_46] : memref<1x32x1xf32, #tpu.memory_space<vmem>>, vector<1x32x1xf32>
      %80 = vector.shape_cast %79 : vector<1x32x1xf32> to vector<32x1xf32>
      %81 = vector.shape_cast %78 : vector<32x1xf32> to vector<1x32x1xf32>
      tpu.vector_store %arg7[%c0_44, %c0_45, %c0_46], %81 {strides = array<i32>} : memref<1x32x1xf32, #tpu.memory_space<vmem>>, vector<1x32x1xf32>,
    } else {
    }
    %c0 = arith.constant 0 : index
    %c0_1 = arith.constant 0 : index
    %3 = vector.load %arg2[%c0, %c0_1] : memref<1x128xf32, #tpu.memory_space<vmem>>, vector<1x128xf32>
    %c0_2 = arith.constant 0 : index
    %c0_3 = arith.constant 0 : index
    %4 = vector.load %arg3[%c0_2, %c0_3] : memref<1x128xi32, #tpu.memory_space<vmem>>, vector<1x128xi32>
    %c0_4 = arith.constant 0 : index
    %c0_5 = arith.constant 0 : index
    %5 = vector.load %arg4[%c0_4, %c0_5] : memref<32x1xi32, #tpu.memory_space<vmem>>, vector<32x1xi32>
    %c2_i32 = arith.constant 2 : i32
    %6 = arith.muli %arg0, %c2_i32 : i32
    %7 = arith.addi %6, %arg1 : i32
    %c128_i32 = arith.constant 128 : i32
    %8 = arith.muli %7, %c128_i32 : i32
    %9 = tpu.iota {dimensions = array<i32: 1>} : vector<1x128xi32>
    %10 = vector.broadcast %8 : i32 to vector<1x128xi32>
    %11 = arith.addi %9, %10 : vector<1x128xi32>
    %c300_i32 = arith.constant 300 : i32
    %12 = vector.broadcast %c300_i32 : i32 to vector<1x128xi32>
    %13 = arith.cmpi slt, %11, %12 : vector<1x128xi32>
    %cst = arith.constant 1.000000e+00 : f32
    %14 = vector.broadcast %cst : f32 to vector<1x128xf32>
    %15 = arith.addf %14, %3 : vector<1x128xf32>
    %cst_6 = arith.constant 1.000000e+00 : f32
    %16 = vector.broadcast %cst_6 : f32 to vector<1x128xf32>
    %17 = arith.subf %16, %3 : vector<1x128xf32>
    %18 = arith.divf %15, %17 : vector<1x128xf32>
    %19 = math.log %18 : vector<1x128xf32>
    %cst_7 = arith.constant 5.000000e-01 : f32
    %20 = vector.broadcast %cst_7 : f32 to vector<1x128xf32>
    %21 = arith.mulf %20, %19 : vector<1x128xf32>
    %22 = arith.mulf %21, %21 : vector<1x128xf32>
    %cst_8 = arith.constant 1.000000e-01 : f32
    %23 = vector.broadcast %cst_8 : f32 to vector<1x128xf32>
    %24 = arith.addf %22, %23 : vector<1x128xf32>
    %25 = vector.broadcast %4 : vector<1x128xi32> to vector<32x128xi32>
    %26 = vector.broadcast %5 : vector<32x1xi32> to vector<32x128xi32>
    %27 = arith.cmpi eq, %25, %26 : vector<32x128xi32>
    %28 = vector.broadcast %13 : vector<1x128xi1> to vector<32x128xi1>
    %29 = arith.andi %27, %28 : vector<32x128xi1>
    %cst_9 = arith.constant 0.000000e+00 : f32
    %30 = vector.shape_cast %24 : vector<1x128xf32> to vector<1x128xf32>
    %31 = vector.broadcast %30 : vector<1x128xf32> to vector<32x128xf32>
    %32 = vector.broadcast %cst_9 : f32 to vector<32x128xf32>
    %33 = arith.select %29, %31, %32 : vector<32x128xi1>, vector<32x128xf32>
    %cst_10 = arith.constant dense<0xFF800000> : vector<32xf32>
    %34 = vector.multi_reduction <maximumf>, %33, %cst_10 [1] : vector<32x128xf32> to vector<32xf32>
    %35 = vector.shape_cast %34 : vector<32xf32> to vector<32x1xf32>
    %36 = tpu.iota {dimensions = array<i32: 1>} : vector<32x128xi32>
    %37 = vector.broadcast %35 : vector<32x1xf32> to vector<32x128xf32>
    %38 = arith.cmpf oeq, %33, %37 : vector<32x128xf32>
    %c128_i32_11 = arith.constant 128 : i32
    %39 = vector.broadcast %c128_i32_11 : i32 to vector<32x128xi32>
    %40 = arith.select %38, %36, %39 : vector<32x128xi1>, vector<32x128xi32>
    %cst_12 = arith.constant dense<2147483647> : vector<32xi32>
    %41 = vector.multi_reduction <minsi>, %40, %cst_12 [1] : vector<32x128xi32> to vector<32xi32>
    %42 = vector.shape_cast %41 : vector<32xi32> to vector<32x1xi32>
    %c0_13 = arith.constant 0 : index
    %c0_14 = arith.constant 0 : index
    %c0_15 = arith.constant 0 : index
    %43 = vector.load %arg5[%c0_13, %c0_14, %c0_15] : memref<1x32x1xf32, #tpu.memory_space<vmem>>, vector<1x32x1xf32>
    %44 = vector.shape_cast %43 : vector<1x32x1xf32> to vector<32x1xf32>
    %45 = arith.cmpf ogt, %35, %44 : vector<32x1xf32>
    %c0_16 = arith.constant 0 : index
    %c0_17 = arith.constant 0 : index
    %c0_18 = arith.constant 0 : index
    %46 = vector.load %arg5[%c0_16, %c0_17, %c0_18] : memref<1x32x1xf32, #tpu.memory_space<vmem>>, vector<1x32x1xf32>
    %47 = vector.shape_cast %46 : vector<1x32x1xf32> to vector<32x1xf32>
    %48 = arith.select %45, %35, %47 : vector<32x1xi1>, vector<32x1xf32>
    %c0_19 = arith.constant 0 : index
    %c0_20 = arith.constant 0 : index
    %c0_21 = arith.constant 0 : index
    %49 = vector.load %arg5[%c0_19, %c0_20, %c0_21] : memref<1x32x1xf32, #tpu.memory_space<vmem>>, vector<1x32x1xf32>
    %50 = vector.shape_cast %49 : vector<1x32x1xf32> to vector<32x1xf32>
    %51 = vector.shape_cast %48 : vector<32x1xf32> to vector<1x32x1xf32>
    tpu.vector_store %arg5[%c0_19, %c0_20, %c0_21], %51 {strides = array<i32>} : memref<1x32x1xf32, #tpu.memory_space<vmem>>, vector<1x32x1xf32>,
    %52 = vector.broadcast %8 : i32 to vector<32x1xi32>
    %53 = arith.addi %42, %52 : vector<32x1xi32>
    %c0_22 = arith.constant 0 : index
    %c0_23 = arith.constant 0 : index
    %c0_24 = arith.constant 0 : index
    %54 = vector.load %arg6[%c0_22, %c0_23, %c0_24] : memref<1x32x1xi32, #tpu.memory_space<vmem>>, vector<1x32x1xi32>
    %55 = vector.shape_cast %54 : vector<1x32x1xi32> to vector<32x1xi32>
    %56 = arith.select %45, %53, %55 : vector<32x1xi1>, vector<32x1xi32>
    %c0_25 = arith.constant 0 : index
    %c0_26 = arith.constant 0 : index
    %c0_27 = arith.constant 0 : index
    %57 = vector.load %arg6[%c0_25, %c0_26, %c0_27] : memref<1x32x1xi32, #tpu.memory_space<vmem>>, vector<1x32x1xi32>
    %58 = vector.shape_cast %57 : vector<1x32x1xi32> to vector<32x1xi32>
    %59 = vector.shape_cast %56 : vector<32x1xi32> to vector<1x32x1xi32>
    tpu.vector_store %arg6[%c0_25, %c0_26, %c0_27], %59 {strides = array<i32>} : memref<1x32x1xi32, #tpu.memory_space<vmem>>, vector<1x32x1xi32>,
    %c0_28 = arith.constant 0 : index
    %c0_29 = arith.constant 0 : index
    %c0_30 = arith.constant 0 : index
    %60 = vector.load %arg7[%c0_28, %c0_29, %c0_30] : memref<1x32x1xf32, #tpu.memory_space<vmem>>, vector<1x32x1xf32>
    %61 = vector.shape_cast %60 : vector<1x32x1xf32> to vector<32x1xf32>
    %62 = arith.extui %29 : vector<32x128xi1> to vector<32x128xi32>
    %63 = arith.sitofp %62 : vector<32x128xi32> to vector<32x128xf32>
    %cst_31 = arith.constant dense<0.000000e+00> : vector<32xf32>
    %64 = vector.multi_reduction <add>, %63, %cst_31 [1] : vector<32x128xf32> to vector<32xf32>
    %65 = vector.shape_cast %64 : vector<32xf32> to vector<32x1xf32>
    %66 = arith.addf %61, %65 : vector<32x1xf32>
    %c0_32 = arith.constant 0 : index
    %c0_33 = arith.constant 0 : index
    %c0_34 = arith.constant 0 : index
    %67 = vector.load %arg7[%c0_32, %c0_33, %c0_34] : memref<1x32x1xf32, #tpu.memory_space<vmem>>, vector<1x32x1xf32>
    %68 = vector.shape_cast %67 : vector<1x32x1xf32> to vector<32x1xf32>
    %69 = vector.shape_cast %66 : vector<32x1xf32> to vector<1x32x1xf32>
    tpu.vector_store %arg7[%c0_32, %c0_33, %c0_34], %69 {strides = array<i32>} : memref<1x32x1xf32, #tpu.memory_space<vmem>>, vector<1x32x1xf32>,
    return
  }
  func.func @transform_0(%arg0: i32, %arg1: i32) -> (i32, i32) {
    %c2_i32 = arith.constant 2 : i32
    %0 = arith.muli %arg0, %c2_i32 : i32
    %1 = arith.addi %0, %arg1 : i32
    %c0_i32 = arith.constant 0 : i32
    %c0_i32_0 = arith.constant 0 : i32
    return %c0_i32, %1 : i32, i32
  }
  func.func @transform_1(%arg0: i32, %arg1: i32) -> (i32, i32) {
    %c2_i32 = arith.constant 2 : i32
    %0 = arith.muli %arg0, %c2_i32 : i32
    %1 = arith.addi %0, %arg1 : i32
    %c0_i32 = arith.constant 0 : i32
    %c0_i32_0 = arith.constant 0 : i32
    return %c0_i32, %1 : i32, i32
  }
  func.func @transform_2(%arg0: i32, %arg1: i32) -> (i32, i32) {
    %c0_i32 = arith.constant 0 : i32
    %c0_i32_0 = arith.constant 0 : i32
    %c0_i32_1 = arith.constant 0 : i32
    return %c0_i32, %c0_i32_0 : i32, i32
  }
  func.func @transform_3(%arg0: i32, %arg1: i32) -> (i32, i32, i32) {
    %c0_i32 = arith.constant 0 : i32
    %c0_i32_0 = arith.constant 0 : i32
    %c0_i32_1 = arith.constant 0 : i32
    return %arg0, %c0_i32, %c0_i32_0 : i32, i32, i32
  }
  func.func @transform_4(%arg0: i32, %arg1: i32) -> (i32, i32, i32) {
    %c0_i32 = arith.constant 0 : i32
    %c0_i32_0 = arith.constant 0 : i32
    %c0_i32_1 = arith.constant 0 : i32
    return %arg0, %c0_i32, %c0_i32_0 : i32, i32, i32
  }
  func.func @transform_5(%arg0: i32, %arg1: i32) -> (i32, i32, i32) {
    %c0_i32 = arith.constant 0 : i32
    %c0_i32_0 = arith.constant 0 : i32
    %c0_i32_1 = arith.constant 0 : i32
    return %arg0, %c0_i32, %c0_i32_0 : i32, i32, i32
  }
}

</mosaic_0001>

<llo_original>
// kernel: tpu_custom_call.1
$region0: #{tpu_custom_call.1}
  #allocation0 [shape = 'u32[]', space=smem, size = 0x4, offset = 0x4, fixed_abs, tag = 'smem constant byte address 0x4 - core index']
  #allocation1 [shape = 'u32[72,128]{1,0:T(1,128)}', space=vmem, size = 0x9000, scoped, tag = 'internal scratch']
  %s0 = inlined_call_operand.vmem [shape: f32[1,512], index: 0, kind: input, shape index: {}]
  %s1 = inlined_call_operand.vmem [shape: s32[1,512], index: 1, kind: input, shape index: {}]
  %s2 = inlined_call_operand.vmem [shape: s32[32,1], index: 2, kind: input, shape index: {}]
  %s3 = inlined_call_operand.vmem [shape: f32[2,32,1], index: 3, kind: output, shape index: {0}]
  %s4 = inlined_call_operand.vmem [shape: s32[2,32,1], index: 4, kind: output, shape index: {1}]
  %s5 = inlined_call_operand.vmem [shape: f32[2,32,1], index: 5, kind: output, shape index: {2}]
  %6 = xla_tuple %s3, %s4, %s5
  %s7 = sld [smem:[#allocation0]]
  $region65: #{tpu_custom_call.1} parent=0
    _
  %s9 = ssub.s32 1, %s7
  %s10 = scalar_select 0, %s9, %s7
  loop: start=0, step=1, limit=6
  $region2: #{tpu_custom_call.1} parent=0 // loop_pre_header
    _
  $region3: #{tpu_custom_call.1} parent=0 // loop_header
    %s12 = sphi 0, %s16
    %p13 = scmp.ge.s32.totalorder %s12, 6
    %s19 = sphi 0, %s31
    %s20 = sphi 0, %s27
    %s21 = sphi 0, %s19
    %s22 = sphi 0, %s20
    %s23 = sphi 0, %s21
    %s24 = sphi 0, %s22
    %s38 = sphi 0, %s40
    %s41 = sphi 0, %s38
    %s42 = sphi 0, %s41
    %s58 = sphi 0, %s42
    %s68 = sphi 0, %s70
    %s71 = sphi 0, %s68
    %s72 = sphi 0, %s71
    %s88 = sphi 0, %s72
    %s92 = sphi 0, %s92
    %s94 = sphi 0, %s92
    %s95 = sphi 0, %s94
    %s109 = sphi 0, %s95
    %s115 = sphi 0, %s117
    %s118 = sphi 0, %s115
    %s119 = sphi 0, %s118
    %s135 = sphi 0, %s119
    %s141 = sphi 0, %s143
    %s144 = sphi 0, %s141
    %s145 = sphi 0, %s144
    %s161 = sphi 0, %s145
    %s167 = sphi 0, %s169
    %s170 = sphi 0, %s167
    %s171 = sphi 0, %s170
    %s187 = sphi 0, %s171
  $region4: #{tpu_custom_call.1} parent=0 // loop_header_branch
    %15 = sbr.rel (%p13) target = $region8
  $region5: #{tpu_custom_call.1} parent=0 // loop_body
    %s17 = ssub.s32 %s12, 1
    %s18 = ssub.s32 %s12, 2
    %s25 = sadd.s32 1, %s20
    %p26 = scmp.ge.s32.totalorder %s25, 2
    %s27 = scalar_select %p26, 0, %s25
    %s28 = sadd.s32 1, %s19
    %s29 = scalar_select %p26, %s28, %s19
    %p30 = scmp.ge.s32.totalorder %s29, 2
    %s31 = scalar_select %p30, 0, %s29
    %s32 = smul.u32 %s19, 2
    %s33 = sadd.s32 %s32, %s20
    %s34 = smul.u32 %s31, 2
    %s35 = sadd.s32 %s34, %s27
    %s36 = ssub.s32 %s33, %s35
    %p37 = scmp.eq.s32.totalorder %s36, 0
    %s39 = sadd.s32 %s38, 1
    %s40 = scalar_select %p37, %s38, %s39
    %p43 = pneg %p37
    %p44 = scmp.eq.s32.totalorder %s12, 3
    %p45 = por %p43, %p44
    %p46 = scmp.ne.s32.totalorder %s38, %s41
    %p47 = scmp.eq.s32.totalorder %s12, 0
    %p48 = por %p46, %p47
    %p49 = scmp.ne.s32.totalorder %s38, %s41
    %p50 = scmp.eq.s32.totalorder %s17, 3
    %p51 = por %p49, %p50
    %p52 = scmp.ne.s32.totalorder %s41, %s42
    %p53 = scmp.eq.s32.totalorder %s17, 0
    %p54 = por %p52, %p53
    %p55 = scmp.ne.s32.totalorder %s41, %s42
    %p56 = scmp.eq.s32.totalorder %s18, 3
    %p57 = por %p55, %p56
    %p59 = scmp.ne.s32.totalorder %s42, %s58
    %p60 = scmp.eq.s32.totalorder %s18, 0
    %p61 = por %p59, %p60
    %s62 = smul.u32 %s19, 2
    %s63 = sadd.s32 %s62, %s20
    %s64 = smul.u32 %s31, 2
    %s65 = sadd.s32 %s64, %s27
    %s66 = ssub.s32 %s63, %s65
    %p67 = scmp.eq.s32.totalorder %s66, 0
    %s69 = sadd.s32 %s68, 1
    %s70 = scalar_select %p67, %s68, %s69
    %p73 = pneg %p67
    %p74 = scmp.eq.s32.totalorder %s12, 3
    %p75 = por %p73, %p74
    %p76 = scmp.ne.s32.totalorder %s68, %s71
    %p77 = scmp.eq.s32.totalorder %s12, 0
    %p78 = por %p76, %p77
    %p79 = scmp.ne.s32.totalorder %s68, %s71
    %p80 = scmp.eq.s32.totalorder %s17, 3
    %p81 = por %p79, %p80
    %p82 = scmp.ne.s32.totalorder %s71, %s72
    %p83 = scmp.eq.s32.totalorder %s17, 0
    %p84 = por %p82, %p83
    %p85 = scmp.ne.s32.totalorder %s71, %s72
    %p86 = scmp.eq.s32.totalorder %s18, 3
    %p87 = por %p85, %p86
    %p89 = scmp.ne.s32.totalorder %s72, %s88
    %p90 = scmp.eq.s32.totalorder %s18, 0
    %p91 = por %p89, %p90
    %s93 = sadd.s32 %s92, 1
    %p96 = scmp.eq.s32.totalorder %s12, 3
    %p97 = scmp.ne.s32.totalorder %s92, %s94
    %p98 = scmp.eq.s32.totalorder %s12, 0
    %p99 = por %p97, %p98
    %p100 = scmp.ne.s32.totalorder %s92, %s94
    %p101 = scmp.eq.s32.totalorder %s17, 3
    %p102 = por %p100, %p101
    %p103 = scmp.ne.s32.totalorder %s94, %s95
    %p104 = scmp.eq.s32.totalorder %s17, 0
    %p105 = por %p103, %p104
    %p106 = scmp.ne.s32.totalorder %s94, %s95
    %p107 = scmp.eq.s32.totalorder %s18, 3
    %p108 = por %p106, %p107
    %p110 = scmp.ne.s32.totalorder %s95, %s109
    %p111 = scmp.eq.s32.totalorder %s18, 0
    %p112 = por %p110, %p111
    %s113 = ssub.s32 %s19, %s31
    %p114 = scmp.eq.s32.totalorder %s113, 0
    %s116 = sadd.s32 %s115, 1
    %s117 = scalar_select %p114, %s115, %s116
    %p120 = pneg %p114
    %p121 = scmp.eq.s32.totalorder %s12, 3
    %p122 = por %p120, %p121
    %p123 = scmp.ne.s32.totalorder %s115, %s118
    %p124 = scmp.eq.s32.totalorder %s12, 0
    %p125 = por %p123, %p124
    %p126 = scmp.ne.s32.totalorder %s115, %s118
    %p127 = scmp.eq.s32.totalorder %s17, 3
    %p128 = por %p126, %p127
    %p129 = scmp.ne.s32.totalorder %s118, %s119
    %p130 = scmp.eq.s32.totalorder %s17, 0
    %p131 = por %p129, %p130
    %p132 = scmp.ne.s32.totalorder %s118, %s119
    %p133 = scmp.eq.s32.totalorder %s18, 3
    %p134 = por %p132, %p133
    %p136 = scmp.ne.s32.totalorder %s119, %s135
    %p137 = scmp.eq.s32.totalorder %s18, 0
    %p138 = por %p136, %p137
    %s139 = ssub.s32 %s19, %s31
    %p140 = scmp.eq.s32.totalorder %s139, 0
    %s142 = sadd.s32 %s141, 1
    %s143 = scalar_select %p140, %s141, %s142
    %p146 = pneg %p140
    %p147 = scmp.eq.s32.totalorder %s12, 3
    %p148 = por %p146, %p147
    %p149 = scmp.ne.s32.totalorder %s141, %s144
    %p150 = scmp.eq.s32.totalorder %s12, 0
    %p151 = por %p149, %p150
    %p152 = scmp.ne.s32.totalorder %s141, %s144
    %p153 = scmp.eq.s32.totalorder %s17, 3
    %p154 = por %p152, %p153
    %p155 = scmp.ne.s32.totalorder %s144, %s145
    %p156 = scmp.eq.s32.totalorder %s17, 0
    %p157 = por %p155, %p156
    %p158 = scmp.ne.s32.totalorder %s144, %s145
    %p159 = scmp.eq.s32.totalorder %s18, 3
    %p160 = por %p158, %p159
    %p162 = scmp.ne.s32.totalorder %s145, %s161
    %p163 = scmp.eq.s32.totalorder %s18, 0
    %p164 = por %p162, %p163
    %s165 = ssub.s32 %s19, %s31
    %p166 = scmp.eq.s32.totalorder %s165, 0
    %s168 = sadd.s32 %s167, 1
    %s169 = scalar_select %p166, %s167, %s168
    %p172 = pneg %p166
    %p173 = scmp.eq.s32.totalorder %s12, 3
    %p174 = por %p172, %p173
    %p175 = scmp.ne.s32.totalorder %s167, %s170
    %p176 = scmp.eq.s32.totalorder %s12, 0
    %p177 = por %p175, %p176
    %p178 = scmp.ne.s32.totalorder %s167, %s170
    %p179 = scmp.eq.s32.totalorder %s17, 3
    %p180 = por %p178, %p179
    %p181 = scmp.ne.s32.totalorder %s170, %s171
    %p182 = scmp.eq.s32.totalorder %s17, 0
    %p183 = por %p181, %p182
    %p184 = scmp.ne.s32.totalorder %s170, %s171
    %p185 = scmp.eq.s32.totalorder %s18, 3
    %p186 = por %p184, %p185
    %p188 = scmp.ne.s32.totalorder %s171, %s187
    %p189 = scmp.eq.s32.totalorder %s18, 0
    %p190 = por %p188, %p189
    %p191 = scmp.le.s32.totalorder 1, %s12
    %p192 = scmp.lt.s32.totalorder %s12, 5
    %p193 = pnand %p191, %p192
    %p194 = pneg %p193
    // Predicated region
    $region9: #{tpu_custom_call.1} parent=5 // pred_check
      _
    $region10: #{tpu_custom_call.1} parent=5 // pred_check_branch
      %196 = sbr.rel (%p193) target = $region12
    $region11: #{tpu_custom_call.1} parent=5 // pred_region
      %s197 = ssub.s32 %s12, 1
      // Predicated region
      $region13: #{tpu_custom_call.1} parent=11 // pred_check
        %p198 = pneg %p105
      $region14: #{tpu_custom_call.1} parent=11 // pred_check_branch
        %200 = sbr.rel (%p198) target = $region16
      $region15: #{tpu_custom_call.1} parent=11 // pred_region
        _
      $region16: #{tpu_custom_call.1} parent=11 // pred_fallthru
        _
    $region12: #{tpu_custom_call.1} parent=5 // pred_fallthru
      _
    %p201 = scmp.lt.s32.totalorder %s12, 4
    // Predicated region
    $region17: #{tpu_custom_call.1} parent=5 // pred_check
      %p202 = pneg %p201
    $region18: #{tpu_custom_call.1} parent=5 // pred_check_branch
      %204 = sbr.rel (%p202) target = $region20
    $region19: #{tpu_custom_call.1} parent=5 // pred_region
      // Predicated region
      $region21: #{tpu_custom_call.1} parent=19 // pred_check
        %p205 = pneg %p48
      $region22: #{tpu_custom_call.1} parent=19 // pred_check_branch
        %207 = sbr.rel (%p205) target = $region24
      $region23: #{tpu_custom_call.1} parent=19 // pred_region
        %s208 = smul.u32 %s19, 2
        %s209 = sadd.s32 %s208, %s20
        %p210 = scmp.lt.s32.totalorder %s209, 3
        %s211 = scalar_select %p210, %s209, 3
        %s212 = scalar_lea.vmem %s0, %s211
        %s213 = smul.u32 %s19, 2
        %s214 = sadd.s32 %s213, %s20
      $region24: #{tpu_custom_call.1} parent=19 // pred_fallthru
        _
      // Predicated region
      $region25: #{tpu_custom_call.1} parent=19 // pred_check
        %p215 = pneg %p78
      $region26: #{tpu_custom_call.1} parent=19 // pred_check_branch
        %217 = sbr.rel (%p215) target = $region28
      $region27: #{tpu_custom_call.1} parent=19 // pred_region
        %s218 = smul.u32 %s19, 2
        %s219 = sadd.s32 %s218, %s20
        %p220 = scmp.lt.s32.totalorder %s219, 3
        %s221 = scalar_select %p220, %s219, 3
        %s222 = scalar_lea.vmem %s1, %s221
        %s223 = smul.u32 %s19, 2
        %s224 = sadd.s32 %s223, %s20
      $region28: #{tpu_custom_call.1} parent=19 // pred_fallthru
        _
    $region20: #{tpu_custom_call.1} parent=5 // pred_fallthru
      _
    %p225 = scmp.le.s32.totalorder 1, %s12
    %p226 = scmp.lt.s32.totalorder %s12, 5
    %p227 = pnand %p225, %p226
    %p228 = pneg %p227
    // Predicated region
    $region29: #{tpu_custom_call.1} parent=5 // pred_check
      _
    $region30: #{tpu_custom_call.1} parent=5 // pred_check_branch
      %230 = sbr.rel (%p227) target = $region32
    $region31: #{tpu_custom_call.1} parent=5 // pred_region
      %s231 = ssub.s32 %s12, 1
      %s232 = smul.u32 %s21, 2
      %s233 = sadd.s32 %s232, %s22
      %p234 = scmp.lt.s32.totalorder %s233, 3
      %s235 = scalar_select %p234, %s233, 3
      %s236 = scalar_lea.vmem %s0, %s235
      %p237 = pneg %p54
      %p238 = pneg %p51
      %s239 = smul.u32 %s21, 2
      %s240 = sadd.s32 %s239, %s22
      %p241 = scmp.lt.s32.totalorder %s240, 3
      %s242 = scalar_select %p241, %s240, 3
      %s243 = scalar_lea.vmem %s1, %s242
      %p244 = pneg %p84
      %p245 = pneg %p81
      %p246 = pneg %p105
      %p247 = pneg %p102
      %p248 = pneg %p131
      %p249 = pneg %p128
      %p250 = scmp.lt.s32.totalorder %s21, 1
      %s251 = scalar_select %p250, %s21, 1
      %s252 = smul.addr %s251, 4
      %s253 = smul.addr %s252, 8
      %s254 = scalar_lea.vmem %s3, %s253
      %p255 = pneg %p157
      %p256 = pneg %p154
      %p257 = scmp.lt.s32.totalorder %s21, 1
      %s258 = scalar_select %p257, %s21, 1
      %s259 = smul.addr %s258, 4
      %s260 = smul.addr %s259, 8
      %s261 = scalar_lea.vmem %s4, %s260
      %p262 = pneg %p183
      %p263 = pneg %p180
      %p264 = scmp.lt.s32.totalorder %s21, 1
      %s265 = scalar_select %p264, %s21, 1
      %s266 = smul.addr %s265, 4
      %s267 = smul.addr %s266, 8
      %s268 = scalar_lea.vmem %s5, %s267
      %s269 = smul.u32 %s21, 2
      %s270 = sadd.s32 %s269, %s22
      %p271 = scmp.lt.s32.totalorder %s270, 3
      %s272 = scalar_select %p271, %s270, 3
      %s273 = scalar_lea.vmem %s0, %s272
      %s274 = smul.u32 %s21, 2
      %s275 = sadd.s32 %s274, %s22
      %s276 = smul.u32 %s21, 2
      %s277 = sadd.s32 %s276, %s22
      %p278 = scmp.lt.s32.totalorder %s277, 3
      %s279 = scalar_select %p278, %s277, 3
      %s280 = scalar_lea.vmem %s1, %s279
      %s281 = smul.u32 %s21, 2
      %s282 = sadd.s32 %s281, %s22
      %p283 = scmp.lt.s32.totalorder %s21, 1
      %s284 = scalar_select %p283, %s21, 1
      %s285 = smul.addr %s284, 4
      %s286 = smul.addr %s285, 8
      %s287 = scalar_lea.vmem %s3, %s286
      %p288 = scmp.lt.s32.totalorder %s21, 1
      %s289 = scalar_select %p288, %s21, 1
      %s290 = smul.addr %s289, 4
      %s291 = smul.addr %s290, 8
      %s292 = scalar_lea.vmem %s4, %s291
      %p293 = scmp.lt.s32.totalorder %s21, 1
      %s294 = scalar_select %p293, %s21, 1
      %s295 = smul.addr %s294, 4
      %s296 = smul.addr %s295, 8
      %s297 = scalar_lea.vmem %s5, %s296
      %p298 = scmp.eq.s32.totalorder %s22, 0
      // Predicated region
      $region33: #{tpu_custom_call.1} parent=31 // pred_check
        %p299 = pneg %p298
      $region34: #{tpu_custom_call.1} parent=31 // pred_check_branch
        %301 = sbr.rel (%p299) target = $region36
      $region35: #{tpu_custom_call.1} parent=31 // pred_region
        %vm302 = vcmask 7168
        %303 = vst.msk [vmem:[%s287] sm:$0xff] %vm302, -inf
        %304 = vst.msk [vmem:[%s287 + $0x8] sm:$0xff] %vm302, -inf
        %305 = vst.msk [vmem:[%s287 + $0x10] sm:$0xff] %vm302, -inf
        %306 = vst.msk [vmem:[%s287 + $0x18] sm:$0xff] %vm302, -inf
        %307 = vst.msk [vmem:[%s292] sm:$0xff] %vm302, 0
        %308 = vst.msk [vmem:[%s292 + $0x8] sm:$0xff] %vm302, 0
        %309 = vst.msk [vmem:[%s292 + $0x10] sm:$0xff] %vm302, 0
        %310 = vst.msk [vmem:[%s292 + $0x18] sm:$0xff] %vm302, 0
        %311 = vst.msk [vmem:[%s297] sm:$0xff] %vm302, 0.0
        %312 = vst.msk [vmem:[%s297 + $0x8] sm:$0xff] %vm302, 0.0
        %313 = vst.msk [vmem:[%s297 + $0x10] sm:$0xff] %vm302, 0.0
        %314 = vst.msk [vmem:[%s297 + $0x18] sm:$0xff] %vm302, 0.0
      $region36: #{tpu_custom_call.1} parent=31 // pred_fallthru
        _
      %v315 = vld [vmem:[%s273] sm:$0x1]
      %v316 = vld [vmem:[%s280] sm:$0x1]
      %v317 = vld [vmem:[%s2] sm:$0xff]
      %v318 = vld [vmem:[%s2 + $0x8] sm:$0xff]
      %v319 = vld [vmem:[%s2 + $0x10] sm:$0xff]
      %v320 = vld [vmem:[%s2 + $0x18] sm:$0xff]
      %s321 = smul.u32 %s21, 2
      %s322 = sadd.s32 %s321, %s22
      %s323 = smul.u32 %s322, 128
      %v324 = vlaneseq
      %v325 = vand.u32 %v324, 127
      %v326 = vstv %s323
      %v327 = vadd.s32 %v325, %v326
      %vm328 = vcmp.lt.s32.totalorder %v327, 300
      %v329 = vadd.f32 %v315, 1.0
      %v330 = vsub.f32 1.0, %v315
      %v331 = vrcp.pop %v330
      %v332 = vmul.f32 %v330, %v331
      %v333 = vsub.f32 1.0, %v332
      %v334 = vmul.f32 %v331, %v333
      %v335 = vadd.f32 %v331, %v334
      %vm336 = vweird.f32 %v330
      %vm337 = vweird.f32 %v331
      %vm338 = vmor %vm336, %vm337
      %v339 = vsel %vm338, %v331, %v335
      %v340 = vand.u32 2147483647, %v330
      %vm341 = vcmp.eq.f32.partialorder %v340, 8.507059e+37
      %v342 = vand.u32 %v330, 2147483648
      %v343 = vor.u32 1.1754944e-38, %v342
      %v344 = vsel %vm341, %v343, %v339
      %v345 = vmul.f32 %v329, %v344
      %v346 = vlog2.pop %v345
      %v347 = vmul.f32 %v346, 0.6931472
      %v348 = vmul.f32 %v347, 0.5
      %v349 = vmul.f32 %v348, %v348
      %v350 = vadd.f32 %v349, 0.1
      %v351 = vperm.slane %v316, 0
      %352 = vset.pattern.permute.xlu0 0
      %353 = vperm.xlu0 %352, %v317
      %v354 = vpop.permute.xlu0 %353
      %355 = vset.pattern.permute.xlu0 0
      %356 = vperm.xlu0 %355, %v318
      %v357 = vpop.permute.xlu0 %356
      %358 = vset.pattern.permute.xlu0 0
      %359 = vperm.xlu0 %358, %v319
      %v360 = vpop.permute.xlu0 %359
      %361 = vset.pattern.permute.xlu0 0
      %362 = vperm.xlu0 %361, %v320
      %v363 = vpop.permute.xlu0 %362
      %vm364 = vcmp.eq.s32.totalorder %v351, %v354
      %vm365 = vcmp.eq.s32.totalorder %v351, %v357
      %vm366 = vcmp.eq.s32.totalorder %v351, %v360
      %vm367 = vcmp.eq.s32.totalorder %v351, %v363
      %v368 = vsel %vm328, 1, 0
      %vm369 = vcmp.eq.s32.totalorder %v368, 1
      %vm370 = vmand %vm364, %vm369
      %vm371 = vmand %vm365, %vm369
      %vm372 = vmand %vm366, %vm369
      %vm373 = vmand %vm367, %vm369
      %v375 = vperm.slane %v350, 0
      %v377 = vsel %vm370, %v375, 0.0
      %v378 = vsel %vm371, %v375, 0.0
      %v379 = vsel %vm372, %v375, 0.0
      %v380 = vsel %vm373, %v375, 0.0
      %381 = vmax.xlane.f32.xlu0 %v377
      %v382 = vpop.xlane.xlu0 %381
      %383 = vmax.xlane.f32.xlu0 %v378
      %v384 = vpop.xlane.xlu0 %383
      %385 = vmax.xlane.f32.xlu0 %v379
      %v386 = vpop.xlane.xlu0 %385
      %387 = vmax.xlane.f32.xlu0 %v380
      %v388 = vpop.xlane.xlu0 %387
      %vm389 = vcmp.eq.f32.partialorder %v377, %v382
      %vm390 = vcmp.eq.f32.partialorder %v378, %v384
      %vm391 = vcmp.eq.f32.partialorder %v379, %v386
      %vm392 = vcmp.eq.f32.partialorder %v380, %v388
      %v393 = vsel %vm389, %v325, 128
      %v394 = vsel %vm390, %v325, 128
      %v395 = vsel %vm391, %v325, 128
      %v396 = vsel %vm392, %v325, 128
      %v397 = vand.u32 %v393, 65535
      %v398 = vshra.s32 %v393, 16
      %v399 = vcvt.s32.f32 %v397
      %v400 = vcvt.s32.f32 %v398
      %401 = vmin.xlane.f32.xlu0 %v400
      %v402 = vpop.xlane.xlu0 %401
      %vm403 = vcmp.eq.f32.partialorder %v400, %v402
      %v404 = vsel %vm403, %v399, inf
      %405 = vmin.xlane.f32.xlu0 %v404
      %v406 = vpop.xlane.xlu0 %405
      %v407 = vcvt.f32.s32 %v406
      %v408 = vcvt.f32.s32 %v402
      %v409 = vshll.u32 %v408, 16
      %v410 = vadd.s32 %v409, %v407
      %v411 = vand.u32 %v394, 65535
      %v412 = vshra.s32 %v394, 16
      %v413 = vcvt.s32.f32 %v411
      %v414 = vcvt.s32.f32 %v412
      %415 = vmin.xlane.f32.xlu0 %v414
      %v416 = vpop.xlane.xlu0 %415
      %vm417 = vcmp.eq.f32.partialorder %v414, %v416
      %v418 = vsel %vm417, %v413, inf
      %419 = vmin.xlane.f32.xlu0 %v418
      %v420 = vpop.xlane.xlu0 %419
      %v421 = vcvt.f32.s32 %v420
      %v422 = vcvt.f32.s32 %v416
      %v423 = vshll.u32 %v422, 16
      %v424 = vadd.s32 %v423, %v421
      %v425 = vand.u32 %v395, 65535
      %v426 = vshra.s32 %v395, 16
      %v427 = vcvt.s32.f32 %v425
      %v428 = vcvt.s32.f32 %v426
      %429 = vmin.xlane.f32.xlu0 %v428
      %v430 = vpop.xlane.xlu0 %429
      %vm431 = vcmp.eq.f32.partialorder %v428, %v430
      %v432 = vsel %vm431, %v427, inf
      %433 = vmin.xlane.f32.xlu0 %v432
      %v434 = vpop.xlane.xlu0 %433
      %v435 = vcvt.f32.s32 %v434
      %v436 = vcvt.f32.s32 %v430
      %v437 = vshll.u32 %v436, 16
      %v438 = vadd.s32 %v437, %v435
      %v439 = vand.u32 %v396, 65535
      %v440 = vshra.s32 %v396, 16
      %v441 = vcvt.s32.f32 %v439
      %v442 = vcvt.s32.f32 %v440
      %443 = vmin.xlane.f32.xlu0 %v442
      %v444 = vpop.xlane.xlu0 %443
      %vm445 = vcmp.eq.f32.partialorder %v442, %v444
      %v446 = vsel %vm445, %v441, inf
      %447 = vmin.xlane.f32.xlu0 %v446
      %v448 = vpop.xlane.xlu0 %447
      %v449 = vcvt.f32.s32 %v448
      %v450 = vcvt.f32.s32 %v444
      %v451 = vshll.u32 %v450, 16
      %v452 = vadd.s32 %v451, %v449
      %v453 = vld [vmem:[%s287] sm:$0xff]
      %v454 = vld [vmem:[%s287 + $0x8] sm:$0xff]
      %v455 = vld [vmem:[%s287 + $0x10] sm:$0xff]
      %v456 = vld [vmem:[%s287 + $0x18] sm:$0xff]
      %vm457 = vcmp.gt.f32.partialorder %v382, %v453
      %vm458 = vcmp.gt.f32.partialorder %v384, %v454
      %vm459 = vcmp.gt.f32.partialorder %v386, %v455
      %vm460 = vcmp.gt.f32.partialorder %v388, %v456
      %v461 = vsel %vm457, %v382, %v453
      %v462 = vsel %vm458, %v384, %v454
      %v463 = vsel %vm459, %v386, %v455
      %v464 = vsel %vm460, %v388, %v456
      %vm465 = vcmask 7168
      %466 = vst.msk [vmem:[%s287] sm:$0xff] %vm465, %v461
      %467 = vst.msk [vmem:[%s287 + $0x8] sm:$0xff] %vm465, %v462
      %468 = vst.msk [vmem:[%s287 + $0x10] sm:$0xff] %vm465, %v463
      %469 = vst.msk [vmem:[%s287 + $0x18] sm:$0xff] %vm465, %v464
      %v470 = vadd.s32 %v410, %v326
      %v471 = vadd.s32 %v424, %v326
      %v472 = vadd.s32 %v438, %v326
      %v473 = vadd.s32 %v452, %v326
      %v474 = vld [vmem:[%s292] sm:$0xff]
      %v475 = vld [vmem:[%s292 + $0x8] sm:$0xff]
      %v476 = vld [vmem:[%s292 + $0x10] sm:$0xff]
      %v477 = vld [vmem:[%s292 + $0x18] sm:$0xff]
      %v478 = vsel %vm457, %v470, %v474
      %v479 = vsel %vm458, %v471, %v475
      %v480 = vsel %vm459, %v472, %v476
      %v481 = vsel %vm460, %v473, %v477
      %482 = vst.msk [vmem:[%s292] sm:$0xff] %vm465, %v478
      %483 = vst.msk [vmem:[%s292 + $0x8] sm:$0xff] %vm465, %v479
      %484 = vst.msk [vmem:[%s292 + $0x10] sm:$0xff] %vm465, %v480
      %485 = vst.msk [vmem:[%s292 + $0x18] sm:$0xff] %vm465, %v481
      %v486 = vld [vmem:[%s297] sm:$0xff]
      %v487 = vld [vmem:[%s297 + $0x8] sm:$0xff]
      %v488 = vld [vmem:[%s297 + $0x10] sm:$0xff]
      %v489 = vld [vmem:[%s297 + $0x18] sm:$0xff]
      %v490 = vsel %vm370, 1, 0
      %v491 = vsel %vm371, 1, 0
      %v492 = vsel %vm372, 1, 0
      %v493 = vsel %vm373, 1, 0
      %v494 = vcvt.s32.f32 %v490
      %v495 = vcvt.s32.f32 %v491
      %v496 = vcvt.s32.f32 %v492
      %v497 = vcvt.s32.f32 %v493
      %498 = vadd.xlane.f32.xlu0 %v494
      %v499 = vpop.xlane.xlu0 %498
      %500 = vadd.xlane.f32.xlu0 %v495
      %v501 = vpop.xlane.xlu0 %500
      %502 = vadd.xlane.f32.xlu0 %v496
      %v503 = vpop.xlane.xlu0 %502
      %504 = vadd.xlane.f32.xlu0 %v497
      %v505 = vpop.xlane.xlu0 %504
      %v506 = vadd.f32 %v486, %v499
      %v507 = vadd.f32 %v487, %v501
      %v508 = vadd.f32 %v488, %v503
      %v509 = vadd.f32 %v489, %v505
      %510 = vst.msk [vmem:[%s297] sm:$0xff] %vm465, %v506
      %511 = vst.msk [vmem:[%s297 + $0x8] sm:$0xff] %vm465, %v507
      %512 = vst.msk [vmem:[%s297 + $0x10] sm:$0xff] %vm465, %v508
      %513 = vst.msk [vmem:[%s297 + $0x18] sm:$0xff] %vm465, %v509
      %p514 = scmp.lt.s32.totalorder %s21, 1
      %s515 = scalar_select %p514, %s21, 1
      %s516 = smul.addr %s515, 4
      %s517 = smul.addr %s516, 8
      %s518 = scalar_lea.vmem %s3, %s517
      %p519 = scmp.lt.s32.totalorder %s21, 1
      %s520 = scalar_select %p519, %s21, 1
      %s521 = smul.addr %s520, 4
      %s522 = smul.addr %s521, 8
      %s523 = scalar_lea.vmem %s4, %s522
      %p524 = scmp.lt.s32.totalorder %s21, 1
      %s525 = scalar_select %p524, %s21, 1
      %s526 = smul.addr %s525, 4
      %s527 = smul.addr %s526, 8
      %s528 = scalar_lea.vmem %s5, %s527
      // Predicated region
      $region37: #{tpu_custom_call.1} parent=31 // pred_check
        %p529 = pneg %p128
      $region38: #{tpu_custom_call.1} parent=31 // pred_check_branch
        %531 = sbr.rel (%p529) target = $region40
      $region39: #{tpu_custom_call.1} parent=31 // pred_region
        _
      $region40: #{tpu_custom_call.1} parent=31 // pred_fallthru
        _
      // Predicated region
      $region41: #{tpu_custom_call.1} parent=31 // pred_check
        %p532 = pneg %p154
      $region42: #{tpu_custom_call.1} parent=31 // pred_check_branch
        %534 = sbr.rel (%p532) target = $region44
      $region43: #{tpu_custom_call.1} parent=31 // pred_region
        _
      $region44: #{tpu_custom_call.1} parent=31 // pred_fallthru
        _
      // Predicated region
      $region45: #{tpu_custom_call.1} parent=31 // pred_check
        %p535 = pneg %p180
      $region46: #{tpu_custom_call.1} parent=31 // pred_check_branch
        %537 = sbr.rel (%p535) target = $region48
      $region47: #{tpu_custom_call.1} parent=31 // pred_region
        _
      $region48: #{tpu_custom_call.1} parent=31 // pred_fallthru
        _
    $region32: #{tpu_custom_call.1} parent=5 // pred_fallthru
      _
    %p538 = scmp.le.s32.totalorder 2, %s12
    // Predicated region
    $region49: #{tpu_custom_call.1} parent=5 // pred_check
      %p539 = pneg %p538
    $region50: #{tpu_custom_call.1} parent=5 // pred_check_branch
      %541 = sbr.rel (%p539) target = $region52
    $region51: #{tpu_custom_call.1} parent=5 // pred_region
      %s542 = ssub.s32 %s12, 2
      // Predicated region
      $region53: #{tpu_custom_call.1} parent=51 // pred_check
        %p543 = pneg %p134
      $region54: #{tpu_custom_call.1} parent=51 // pred_check_branch
        %545 = sbr.rel (%p543) target = $region56
      $region55: #{tpu_custom_call.1} parent=51 // pred_region
        %p546 = scmp.lt.s32.totalorder %s23, 1
        %s547 = scalar_select %p546, %s23, 1
        %s548 = smul.addr %s547, 4
        %s549 = smul.addr %s548, 8
        %s550 = scalar_lea.vmem %s3, %s549
      $region56: #{tpu_custom_call.1} parent=51 // pred_fallthru
        _
      // Predicated region
      $region57: #{tpu_custom_call.1} parent=51 // pred_check
        %p551 = pneg %p160
      $region58: #{tpu_custom_call.1} parent=51 // pred_check_branch
        %553 = sbr.rel (%p551) target = $region60
      $region59: #{tpu_custom_call.1} parent=51 // pred_region
        %p554 = scmp.lt.s32.totalorder %s23, 1
        %s555 = scalar_select %p554, %s23, 1
        %s556 = smul.addr %s555, 4
        %s557 = smul.addr %s556, 8
        %s558 = scalar_lea.vmem %s4, %s557
      $region60: #{tpu_custom_call.1} parent=51 // pred_fallthru
        _
      // Predicated region
      $region61: #{tpu_custom_call.1} parent=51 // pred_check
        %p559 = pneg %p186
      $region62: #{tpu_custom_call.1} parent=51 // pred_check_branch
        %561 = sbr.rel (%p559) target = $region64
      $region63: #{tpu_custom_call.1} parent=51 // pred_region
        %p562 = scmp.lt.s32.totalorder %s23, 1
        %s563 = scalar_select %p562, %s23, 1
        %s564 = smul.addr %s563, 4
        %s565 = smul.addr %s564, 8
        %s566 = scalar_lea.vmem %s5, %s565
      $region64: #{tpu_custom_call.1} parent=51 // pred_fallthru
        _
    $region52: #{tpu_custom_call.1} parent=5 // pred_fallthru
      _
  $region6: #{tpu_custom_call.1} parent=0 // loop_footer
    %s16 = sadd.s32 1, %s12
  $region7: #{tpu_custom_call.1} parent=0 // loop_footer_branch
    %11 = sbr.rel target = $region3
  $region8: #{tpu_custom_call.1} parent=0 // loop_exit
    _

</llo_original>
